<compile_context>
chip_gen: v6e
topology: v6e:2x2x1
jax: 0.10.0
libtpu: 0.0.40
codegen_flags: <defaults>
</compile_context>

<pallas_src>
import functools

import jax
import jax.numpy as jnp
from jax.experimental import pallas as pl
from jax.experimental.pallas import tpu as pltpu


def _round_up(x, m):
    return (x + m - 1) // m * m


def _cdiv(a, b):
    return -(-a // b)


def _vmem_capacity_bytes():
    try:
        return int(pltpu.get_tpu_info().vmem_capacity_bytes)
    except Exception:
        return 64 << 20  # v7x per-TC physical; conservative for v5e / v6e


def _choose_group_tile(O, D2, D1):
    """Pick the output-group tile TO, j-chunk CH and output layout."""
    cap = _vmem_capacity_bytes()
    budget = min(int(cap * 0.35), 24 << 20)      # counted working-set target
    d1_lanes = _round_up(max(D1, 1), 128)
    per_to_w = 2 * 2 * D2 * d1_lanes             # 2 buffers * bf16 * padded lanes
    to_cap = max(1, (budget // 2) // per_to_w)   # weight tile <= ~half budget
    TO = max(1, min(O, 256, to_cap))
    if TO < O and TO >= 128:
        TO = (TO // 128) * 128                   # lane-aligned tiles -> plain (B, O) output
    n_o = _cdiv(O, TO)
    out_3d = (n_o > 1) and (TO % 128 != 0)       # only then use transposed output layout
    CH = max(1, min(D2, max(1, 512 // TO)))      # fused matmul N = CH*TO ~ 512 columns
    return TO, n_o, CH, out_3d, budget, cap


def prepare_biaffine(U, in1_features, in2_features, out_features,
                     bias=(True, True, True)):
    """One-time weight prep (call at model init, NOT per forward)."""
    b0, b1 = bool(bias[0]), bool(bias[1])
    IN1, IN2, O = int(in1_features), int(in2_features), int(out_features)
    D1 = IN1 + int(b0)
    D2 = IN2 + int(b1)
    assert U.shape == (O * D2, D1), (U.shape, (O * D2, D1))

    TO, n_o, CH, out_3d, budget, cap = _choose_group_tile(O, D2, D1)
    O_pad = n_o * TO

    U3 = jnp.asarray(U, jnp.float32).reshape(O, D2, D1)
    if O_pad > O:
        U3 = jnp.pad(U3, ((0, O_pad - O), (0, 0), (0, 0)))
    # (O_pad, D2, D1) -> (n_o, TO, D2, D1) -> (n_o, D2, TO, D1):
    # rows become j-major / o-minor inside each output tile.
    U4 = U3.reshape(n_o, TO, D2, D1).transpose(0, 2, 1, 3)
    if b0:
        w_main = U4[..., :IN1].reshape(n_o, D2 * TO, IN1).astype(jnp.bfloat16)
        w_b1 = U4[..., IN1].reshape(n_o, 1, D2 * TO).astype(jnp.float32)
    else:
        w_main = U4.reshape(n_o, D2 * TO, D1).astype(jnp.bfloat16)
        w_b1 = jnp.zeros((n_o, 1, D2 * TO), jnp.float32)

    cfg = dict(IN1=IN1, IN2=IN2, O=O, D1=D1, D2=D2, TO=TO, n_o=n_o, CH=CH,
               out_3d=out_3d, b0=b0, b1=b1, budget=budget, cap=cap)
    return w_main, w_b1, cfg


def _biaffine_kernel(x1_ref, x2_ref, w_ref, wb1_ref, o_ref, *,
                     IN2, D2, TO, CH, b0, b1):
    # x1_ref : (TB, IN1)        f32   raw input1 tile (no ones column, no pad)
    # x2_ref : (TB, IN2)        f32   raw input2 tile
    # w_ref  : (1, D2*TO, Kw)   bf16  j-major weight tile (bias-0 column split off)
    # wb1_ref: (1, 1, D2*TO)    f32   bias-0 row of U (zeros if bias[0] is False)
    # o_ref  : (TB, TO) or (1, TB, TO) f32
    del b1  # handled statically via D2 vs IN2
    TB = x1_ref.shape[0]
    x1 = x1_ref[...].astype(jnp.bfloat16)        # cast per-tile in VMEM
    acc = jnp.zeros((TB, TO), jnp.float32)
    if b0:
        wb1 = wb1_ref[0]                          # (1, D2*TO) f32

    n_ch = _cdiv(D2, CH)
    for c in range(n_ch):                         # a few fused MXU calls
        j0 = c * CH
        j1 = min(D2, j0 + CH)
        # One MXU matmul covering (j1-j0) output groups: N = (j1-j0)*TO cols.
        aff = jax.lax.dot_general(
            x1, w_ref[0, j0 * TO:j1 * TO, :],
            dimension_numbers=(((1,), (1,)), ((), ())),
            preferred_element_type=jnp.float32)   # (TB, (j1-j0)*TO) f32
        if b0:
            aff = aff + wb1[:, j0 * TO:j1 * TO]
        # Group reduction on the VPU: acc[:, o] += aff[:, r*TO + o] * x2[:, j]
        for r in range(j1 - j0):
            j = j0 + r
            sl = aff[:, r * TO:(r + 1) * TO]
            if j < IN2:
                acc = acc + sl * x2_ref[:, j:j + 1]
            else:                                 # bias[1] "ones" column of x2
                acc = acc + sl

    if len(o_ref.shape) == 3:
        o_ref[0, :, :] = acc                      # single dense store
    else:
        o_ref[...] = acc                          # single dense store


def biaffine_forward(input1, input2, prepared):
    """Pallas Biaffine.forward; returns (B, out_features) float32."""
    w_main, w_b1, cfg = prepared
    IN1, IN2, O = cfg["IN1"], cfg["IN2"], cfg["O"]
    D2, TO, n_o, CH = cfg["D2"], cfg["TO"], cfg["n_o"], cfg["CH"]
    out_3d, b0, b1 = cfg["out_3d"], cfg["b0"], cfg["b1"]
    budget, cap = cfg["budget"], cfg["cap"]

    B = input1.shape[0]
    assert input1.shape == (B, IN1) and input2.shape == (B, IN2)
    x1 = jnp.asarray(input1, jnp.float32)
    x2 = jnp.asarray(input2, jnp.float32)
    B8 = _round_up(B, 8)
    if B8 != B:  # tiny tail pad (<= 7 rows); common case touches nothing
        x1 = jnp.pad(x1, ((0, B8 - B), (0, 0)))
        x2 = jnp.pad(x2, ((0, B8 - B), (0, 0)))

    # Batch tile from whatever VMEM budget remains after the weight tile.
    lane = 128
    kw = w_main.shape[-1]
    w_bytes = 2 * 2 * D2 * TO * _round_up(kw, lane)
    x_row = 4 * 2 * (_round_up(IN1, lane) + _round_up(IN2, lane))  # f32, 2x buffered
    o_row = 4 * 3 * _round_up(TO, lane)                            # out (2 bufs) + acc
    a_row = 4 * _round_up(CH * TO, lane) + 2 * _round_up(IN1, lane)
    per_row = x_row + o_row + a_row
    rows_budget = max(budget - w_bytes, 64 * 1024)
    TB = max(8, min(1024, rows_budget // per_row, B8))
    TB = (TB // 8) * 8
    nb = _cdiv(B8, TB)

    # Grid order: stream the bigger operand exactly once.
    u_bytes = w_main.size * 2
    x_bytes = (x1.size + x2.size) * 4
    o_outer = (n_o - 1) * x_bytes <= (nb - 1) * u_bytes

    if o_outer:
        grid = (n_o, nb)
        bx = lambda oi, bi: (bi, 0)
        bw = lambda oi, bi: (oi, 0, 0)
        bo2 = lambda oi, bi: (bi, oi)
        bo3 = lambda oi, bi: (oi, bi, 0)
    else:
        grid = (nb, n_o)
        bx = lambda bi, oi: (bi, 0)
        bw = lambda bi, oi: (oi, 0, 0)
        bo2 = lambda bi, oi: (bi, oi)
        bo3 = lambda bi, oi: (oi, bi, 0)

    if out_3d:
        out_shape = jax.ShapeDtypeStruct((n_o, B8, TO), jnp.float32)
        out_spec = pl.BlockSpec((1, TB, TO), bo3)
    else:
        out_shape = jax.ShapeDtypeStruct((B8, O), jnp.float32)
        out_spec = pl.BlockSpec((TB, TO), bo2)

    kernel = functools.partial(_biaffine_kernel, IN2=IN2, D2=D2, TO=TO,
                               CH=CH, b0=b0, b1=b1)
    out = pl.pallas_call(
        kernel,
        out_shape=out_shape,
        grid=grid,
        in_specs=[
            pl.BlockSpec((TB, IN1), bx),
            pl.BlockSpec((TB, IN2), bx),
            pl.BlockSpec((1, D2 * TO, kw), bw),
            pl.BlockSpec((1, 1, D2 * TO), bw),
        ],
        out_specs=out_spec,
        compiler_params=pltpu.CompilerParams(
            dimension_semantics=("parallel", "parallel"),
            vmem_limit_bytes=min(int(cap * 0.7), 100 << 20)),
    )(x1, x2, w_main, w_b1)

    if out_3d:
        out = out.transpose(1, 0, 2).reshape(B8, n_o * TO)[:, :O]
    return out[:B]


if __name__ == "__main__":
    B = 8
    in1_features = 32
    in2_features = 32
    out_features = 8
    bias = (True, True, True)

    D1 = in1_features + int(bias[0])
    D2 = in2_features + int(bias[1])
    K = out_features * D2

    key = jax.random.PRNGKey(0)
    k1, k2, k3 = jax.random.split(key, 3)
    input1 = jax.random.normal(k1, (B, in1_features), dtype=jnp.float32)
    input2 = jax.random.normal(k2, (B, in2_features), dtype=jnp.float32)
    # The PyTorch module zero-inits U (output trivially zero); use non-zero
    # deterministic weights so the kernel is actually exercised.
    U = 0.1 * jax.random.normal(k3, (K, D1), dtype=jnp.float32)

    prepared = prepare_biaffine(U, in1_features, in2_features, out_features, bias)
    out = biaffine_forward(input1, input2, prepared)
    out = jax.block_until_ready(out)
    assert out.shape == (B, out_features)

    def reference(i1, i2, Uf):
        n = i1.shape[0]
        a = jnp.concatenate([i1, jnp.ones((n, 1), i1.dtype)], 1) if bias[0] else i1
        b = jnp.concatenate([i2, jnp.ones((n, 1), i2.dtype)], 1) if bias[1] else i2
        aff = (a @ Uf.T).reshape(n, out_features, D2)
        return jnp.einsum("boj,bj->bo", aff, b)

    # Tight check against a reference fed the same quantization the kernel
    # uses (bf16 input1 + main weight; f32 input2 + bias-0 column of U).
    q = lambda a: a.astype(jnp.bfloat16).astype(jnp.float32)
    Uq = jnp.concatenate([q(U[:, :in1_features]), U[:, in1_features:]], axis=1)
    ref_q = reference(q(input1), input2, Uq)
    assert jnp.allclose(out, ref_q, atol=2e-3, rtol=2e-3), (out, ref_q)

    # Loose check against the full-precision reference.
    ref_full = reference(input1, input2, U)
    assert jnp.allclose(out, ref_full, atol=5e-2, rtol=5e-2), (out, ref_full)

    print("KERNEL_OK")
</pallas_src>

<mosaic_0001>
module attributes {stable_mosaic.version = 11 : i64} {
  func.func @_biaffine_kernel(%arg0: i32, %arg1: i32, %arg2: memref<8x32xf32, #tpu.memory_space<vmem>>, %arg3: memref<8x32xf32, #tpu.memory_space<vmem>>, %arg4: memref<1x264x32xbf16, #tpu.memory_space<vmem>>, %arg5: memref<1x1x264xf32, #tpu.memory_space<vmem>>, %arg6: memref<8x8xf32, #tpu.memory_space<vmem>>) attributes {dimension_semantics = [#tpu.dimension_semantics<parallel>, #tpu.dimension_semantics<parallel>], iteration_bounds = array<i64: 1, 1>, scalar_prefetch = 0 : i64, scratch_operands = 0 : i64, tpu.core_type = #tpu.core_type<tc>, window_params = [{transform_indices = @transform_0, window_bounds = array<i64: 8, 32>}, {transform_indices = @transform_1, window_bounds = array<i64: 8, 32>}, {transform_indices = @transform_2, window_bounds = array<i64: 1, 264, 32>}, {transform_indices = @transform_3, window_bounds = array<i64: 1, 1, 264>}, {transform_indices = @transform_4, window_bounds = array<i64: 8, 8>}]} {
    %c0 = arith.constant 0 : index
    %c0_0 = arith.constant 0 : index
    %0 = vector.load %arg2[%c0, %c0_0] : memref<8x32xf32, #tpu.memory_space<vmem>>, vector<8x32xf32>
    %1 = arith.truncf %0 : vector<8x32xf32> to vector<8x32xbf16>
    %cst = arith.constant 0.000000e+00 : f32
    %2 = vector.broadcast %cst : f32 to vector<8x8xf32>
    %c0_1 = arith.constant 0 : index
    %c0_2 = arith.constant 0 : index
    %c0_3 = arith.constant 0 : index
    %3 = vector.load %arg5[%c0_1, %c0_2, %c0_3] : memref<1x1x264xf32, #tpu.memory_space<vmem>>, vector<1x1x264xf32>
    %4 = vector.shape_cast %3 : vector<1x1x264xf32> to vector<1x264xf32>
    %c0_4 = arith.constant 0 : index
    %c0_5 = arith.constant 0 : index
    %c0_6 = arith.constant 0 : index
    %5 = vector.load %arg4[%c0_4, %c0_5, %c0_6] : memref<1x264x32xbf16, #tpu.memory_space<vmem>>, vector<1x264x32xbf16>
    %6 = vector.shape_cast %5 : vector<1x264x32xbf16> to vector<264x32xbf16>
    %cst_7 = arith.constant dense<0.000000e+00> : vector<8x264xf32>
    %7 = tpu.matmul %1, %6, %cst_7 {dimension_numbers = #tpu.dot_dimension_numbers<[1], [1], [0], [0], [0, 0, 1, 0], [], []>} : vector<8x32xbf16>, vector<264x32xbf16>, vector<8x264xf32> -> vector<8x264xf32>
    %8 = vector.broadcast %4 : vector<1x264xf32> to vector<8x264xf32>
    %9 = arith.addf %7, %8 : vector<8x264xf32>
    %10 = vector.extract_strided_slice %9 {offsets = [0, 0], sizes = [8, 8], strides = [1, 1]} : vector<8x264xf32> to vector<8x8xf32>
    %c0_8 = arith.constant 0 : index
    %c0_9 = arith.constant 0 : index
    %11 = vector.load %arg3[%c0_8, %c0_9] : memref<8x32xf32, #tpu.memory_space<vmem>>, vector<8x1xf32>
    %12 = vector.broadcast %11 : vector<8x1xf32> to vector<8x8xf32>
    %13 = arith.mulf %10, %12 : vector<8x8xf32>
    %14 = arith.addf %2, %13 : vector<8x8xf32>
    %15 = vector.extract_strided_slice %9 {offsets = [0, 8], sizes = [8, 8], strides = [1, 1]} : vector<8x264xf32> to vector<8x8xf32>
    %c0_10 = arith.constant 0 : index
    %c1 = arith.constant 1 : index
    %16 = vector.load %arg3[%c0_10, %c1] : memref<8x32xf32, #tpu.memory_space<vmem>>, vector<8x1xf32>
    %17 = vector.broadcast %16 : vector<8x1xf32> to vector<8x8xf32>
    %18 = arith.mulf %15, %17 : vector<8x8xf32>
    %19 = arith.addf %14, %18 : vector<8x8xf32>
    %20 = vector.extract_strided_slice %9 {offsets = [0, 16], sizes = [8, 8], strides = [1, 1]} : vector<8x264xf32> to vector<8x8xf32>
    %c0_11 = arith.constant 0 : index
    %c2 = arith.constant 2 : index
    %21 = vector.load %arg3[%c0_11, %c2] : memref<8x32xf32, #tpu.memory_space<vmem>>, vector<8x1xf32>
    %22 = vector.broadcast %21 : vector<8x1xf32> to vector<8x8xf32>
    %23 = arith.mulf %20, %22 : vector<8x8xf32>
    %24 = arith.addf %19, %23 : vector<8x8xf32>
    %25 = vector.extract_strided_slice %9 {offsets = [0, 24], sizes = [8, 8], strides = [1, 1]} : vector<8x264xf32> to vector<8x8xf32>
    %c0_12 = arith.constant 0 : index
    %c3 = arith.constant 3 : index
    %26 = vector.load %arg3[%c0_12, %c3] : memref<8x32xf32, #tpu.memory_space<vmem>>, vector<8x1xf32>
    %27 = vector.broadcast %26 : vector<8x1xf32> to vector<8x8xf32>
    %28 = arith.mulf %25, %27 : vector<8x8xf32>
    %29 = arith.addf %24, %28 : vector<8x8xf32>
    %30 = vector.extract_strided_slice %9 {offsets = [0, 32], sizes = [8, 8], strides = [1, 1]} : vector<8x264xf32> to vector<8x8xf32>
    %c0_13 = arith.constant 0 : index
    %c4 = arith.constant 4 : index
    %31 = vector.load %arg3[%c0_13, %c4] : memref<8x32xf32, #tpu.memory_space<vmem>>, vector<8x1xf32>
    %32 = vector.broadcast %31 : vector<8x1xf32> to vector<8x8xf32>
    %33 = arith.mulf %30, %32 : vector<8x8xf32>
    %34 = arith.addf %29, %33 : vector<8x8xf32>
    %35 = vector.extract_strided_slice %9 {offsets = [0, 40], sizes = [8, 8], strides = [1, 1]} : vector<8x264xf32> to vector<8x8xf32>
    %c0_14 = arith.constant 0 : index
    %c5 = arith.constant 5 : index
    %36 = vector.load %arg3[%c0_14, %c5] : memref<8x32xf32, #tpu.memory_space<vmem>>, vector<8x1xf32>
    %37 = vector.broadcast %36 : vector<8x1xf32> to vector<8x8xf32>
    %38 = arith.mulf %35, %37 : vector<8x8xf32>
    %39 = arith.addf %34, %38 : vector<8x8xf32>
    %40 = vector.extract_strided_slice %9 {offsets = [0, 48], sizes = [8, 8], strides = [1, 1]} : vector<8x264xf32> to vector<8x8xf32>
    %c0_15 = arith.constant 0 : index
    %c6 = arith.constant 6 : index
    %41 = vector.load %arg3[%c0_15, %c6] : memref<8x32xf32, #tpu.memory_space<vmem>>, vector<8x1xf32>
    %42 = vector.broadcast %41 : vector<8x1xf32> to vector<8x8xf32>
    %43 = arith.mulf %40, %42 : vector<8x8xf32>
    %44 = arith.addf %39, %43 : vector<8x8xf32>
    %45 = vector.extract_strided_slice %9 {offsets = [0, 56], sizes = [8, 8], strides = [1, 1]} : vector<8x264xf32> to vector<8x8xf32>
    %c0_16 = arith.constant 0 : index
    %c7 = arith.constant 7 : index
    %46 = vector.load %arg3[%c0_16, %c7] : memref<8x32xf32, #tpu.memory_space<vmem>>, vector<8x1xf32>
    %47 = vector.broadcast %46 : vector<8x1xf32> to vector<8x8xf32>
    %48 = arith.mulf %45, %47 : vector<8x8xf32>
    %49 = arith.addf %44, %48 : vector<8x8xf32>
    %50 = vector.extract_strided_slice %9 {offsets = [0, 64], sizes = [8, 8], strides = [1, 1]} : vector<8x264xf32> to vector<8x8xf32>
    %c0_17 = arith.constant 0 : index
    %c8 = arith.constant 8 : index
    %51 = vector.load %arg3[%c0_17, %c8] : memref<8x32xf32, #tpu.memory_space<vmem>>, vector<8x1xf32>
    %52 = vector.broadcast %51 : vector<8x1xf32> to vector<8x8xf32>
    %53 = arith.mulf %50, %52 : vector<8x8xf32>
    %54 = arith.addf %49, %53 : vector<8x8xf32>
    %55 = vector.extract_strided_slice %9 {offsets = [0, 72], sizes = [8, 8], strides = [1, 1]} : vector<8x264xf32> to vector<8x8xf32>
    %c0_18 = arith.constant 0 : index
    %c9 = arith.constant 9 : index
    %56 = vector.load %arg3[%c0_18, %c9] : memref<8x32xf32, #tpu.memory_space<vmem>>, vector<8x1xf32>
    %57 = vector.broadcast %56 : vector<8x1xf32> to vector<8x8xf32>
    %58 = arith.mulf %55, %57 : vector<8x8xf32>
    %59 = arith.addf %54, %58 : vector<8x8xf32>
    %60 = vector.extract_strided_slice %9 {offsets = [0, 80], sizes = [8, 8], strides = [1, 1]} : vector<8x264xf32> to vector<8x8xf32>
    %c0_19 = arith.constant 0 : index
    %c10 = arith.constant 10 : index
    %61 = vector.load %arg3[%c0_19, %c10] : memref<8x32xf32, #tpu.memory_space<vmem>>, vector<8x1xf32>
    %62 = vector.broadcast %61 : vector<8x1xf32> to vector<8x8xf32>
    %63 = arith.mulf %60, %62 : vector<8x8xf32>
    %64 = arith.addf %59, %63 : vector<8x8xf32>
    %65 = vector.extract_strided_slice %9 {offsets = [0, 88], sizes = [8, 8], strides = [1, 1]} : vector<8x264xf32> to vector<8x8xf32>
    %c0_20 = arith.constant 0 : index
    %c11 = arith.constant 11 : index
    %66 = vector.load %arg3[%c0_20, %c11] : memref<8x32xf32, #tpu.memory_space<vmem>>, vector<8x1xf32>
    %67 = vector.broadcast %66 : vector<8x1xf32> to vector<8x8xf32>
    %68 = arith.mulf %65, %67 : vector<8x8xf32>
    %69 = arith.addf %64, %68 : vector<8x8xf32>
    %70 = vector.extract_strided_slice %9 {offsets = [0, 96], sizes = [8, 8], strides = [1, 1]} : vector<8x264xf32> to vector<8x8xf32>
    %c0_21 = arith.constant 0 : index
    %c12 = arith.constant 12 : index
    %71 = vector.load %arg3[%c0_21, %c12] : memref<8x32xf32, #tpu.memory_space<vmem>>, vector<8x1xf32>
    %72 = vector.broadcast %71 : vector<8x1xf32> to vector<8x8xf32>
    %73 = arith.mulf %70, %72 : vector<8x8xf32>
    %74 = arith.addf %69, %73 : vector<8x8xf32>
    %75 = vector.extract_strided_slice %9 {offsets = [0, 104], sizes = [8, 8], strides = [1, 1]} : vector<8x264xf32> to vector<8x8xf32>
    %c0_22 = arith.constant 0 : index
    %c13 = arith.constant 13 : index
    %76 = vector.load %arg3[%c0_22, %c13] : memref<8x32xf32, #tpu.memory_space<vmem>>, vector<8x1xf32>
    %77 = vector.broadcast %76 : vector<8x1xf32> to vector<8x8xf32>
    %78 = arith.mulf %75, %77 : vector<8x8xf32>
    %79 = arith.addf %74, %78 : vector<8x8xf32>
    %80 = vector.extract_strided_slice %9 {offsets = [0, 112], sizes = [8, 8], strides = [1, 1]} : vector<8x264xf32> to vector<8x8xf32>
    %c0_23 = arith.constant 0 : index
    %c14 = arith.constant 14 : index
    %81 = vector.load %arg3[%c0_23, %c14] : memref<8x32xf32, #tpu.memory_space<vmem>>, vector<8x1xf32>
    %82 = vector.broadcast %81 : vector<8x1xf32> to vector<8x8xf32>
    %83 = arith.mulf %80, %82 : vector<8x8xf32>
    %84 = arith.addf %79, %83 : vector<8x8xf32>
    %85 = vector.extract_strided_slice %9 {offsets = [0, 120], sizes = [8, 8], strides = [1, 1]} : vector<8x264xf32> to vector<8x8xf32>
    %c0_24 = arith.constant 0 : index
    %c15 = arith.constant 15 : index
    %86 = vector.load %arg3[%c0_24, %c15] : memref<8x32xf32, #tpu.memory_space<vmem>>, vector<8x1xf32>
    %87 = vector.broadcast %86 : vector<8x1xf32> to vector<8x8xf32>
    %88 = arith.mulf %85, %87 : vector<8x8xf32>
    %89 = arith.addf %84, %88 : vector<8x8xf32>
    %90 = vector.extract_strided_slice %9 {offsets = [0, 128], sizes = [8, 8], strides = [1, 1]} : vector<8x264xf32> to vector<8x8xf32>
    %c0_25 = arith.constant 0 : index
    %c16 = arith.constant 16 : index
    %91 = vector.load %arg3[%c0_25, %c16] : memref<8x32xf32, #tpu.memory_space<vmem>>, vector<8x1xf32>
    %92 = vector.broadcast %91 : vector<8x1xf32> to vector<8x8xf32>
    %93 = arith.mulf %90, %92 : vector<8x8xf32>
    %94 = arith.addf %89, %93 : vector<8x8xf32>
    %95 = vector.extract_strided_slice %9 {offsets = [0, 136], sizes = [8, 8], strides = [1, 1]} : vector<8x264xf32> to vector<8x8xf32>
    %c0_26 = arith.constant 0 : index
    %c17 = arith.constant 17 : index
    %96 = vector.load %arg3[%c0_26, %c17] : memref<8x32xf32, #tpu.memory_space<vmem>>, vector<8x1xf32>
    %97 = vector.broadcast %96 : vector<8x1xf32> to vector<8x8xf32>
    %98 = arith.mulf %95, %97 : vector<8x8xf32>
    %99 = arith.addf %94, %98 : vector<8x8xf32>
    %100 = vector.extract_strided_slice %9 {offsets = [0, 144], sizes = [8, 8], strides = [1, 1]} : vector<8x264xf32> to vector<8x8xf32>
    %c0_27 = arith.constant 0 : index
    %c18 = arith.constant 18 : index
    %101 = vector.load %arg3[%c0_27, %c18] : memref<8x32xf32, #tpu.memory_space<vmem>>, vector<8x1xf32>
    %102 = vector.broadcast %101 : vector<8x1xf32> to vector<8x8xf32>
    %103 = arith.mulf %100, %102 : vector<8x8xf32>
    %104 = arith.addf %99, %103 : vector<8x8xf32>
    %105 = vector.extract_strided_slice %9 {offsets = [0, 152], sizes = [8, 8], strides = [1, 1]} : vector<8x264xf32> to vector<8x8xf32>
    %c0_28 = arith.constant 0 : index
    %c19 = arith.constant 19 : index
    %106 = vector.load %arg3[%c0_28, %c19] : memref<8x32xf32, #tpu.memory_space<vmem>>, vector<8x1xf32>
    %107 = vector.broadcast %106 : vector<8x1xf32> to vector<8x8xf32>
    %108 = arith.mulf %105, %107 : vector<8x8xf32>
    %109 = arith.addf %104, %108 : vector<8x8xf32>
    %110 = vector.extract_strided_slice %9 {offsets = [0, 160], sizes = [8, 8], strides = [1, 1]} : vector<8x264xf32> to vector<8x8xf32>
    %c0_29 = arith.constant 0 : index
    %c20 = arith.constant 20 : index
    %111 = vector.load %arg3[%c0_29, %c20] : memref<8x32xf32, #tpu.memory_space<vmem>>, vector<8x1xf32>
    %112 = vector.broadcast %111 : vector<8x1xf32> to vector<8x8xf32>
    %113 = arith.mulf %110, %112 : vector<8x8xf32>
    %114 = arith.addf %109, %113 : vector<8x8xf32>
    %115 = vector.extract_strided_slice %9 {offsets = [0, 168], sizes = [8, 8], strides = [1, 1]} : vector<8x264xf32> to vector<8x8xf32>
    %c0_30 = arith.constant 0 : index
    %c21 = arith.constant 21 : index
    %116 = vector.load %arg3[%c0_30, %c21] : memref<8x32xf32, #tpu.memory_space<vmem>>, vector<8x1xf32>
    %117 = vector.broadcast %116 : vector<8x1xf32> to vector<8x8xf32>
    %118 = arith.mulf %115, %117 : vector<8x8xf32>
    %119 = arith.addf %114, %118 : vector<8x8xf32>
    %120 = vector.extract_strided_slice %9 {offsets = [0, 176], sizes = [8, 8], strides = [1, 1]} : vector<8x264xf32> to vector<8x8xf32>
    %c0_31 = arith.constant 0 : index
    %c22 = arith.constant 22 : index
    %121 = vector.load %arg3[%c0_31, %c22] : memref<8x32xf32, #tpu.memory_space<vmem>>, vector<8x1xf32>
    %122 = vector.broadcast %121 : vector<8x1xf32> to vector<8x8xf32>
    %123 = arith.mulf %120, %122 : vector<8x8xf32>
    %124 = arith.addf %119, %123 : vector<8x8xf32>
    %125 = vector.extract_strided_slice %9 {offsets = [0, 184], sizes = [8, 8], strides = [1, 1]} : vector<8x264xf32> to vector<8x8xf32>
    %c0_32 = arith.constant 0 : index
    %c23 = arith.constant 23 : index
    %126 = vector.load %arg3[%c0_32, %c23] : memref<8x32xf32, #tpu.memory_space<vmem>>, vector<8x1xf32>
    %127 = vector.broadcast %126 : vector<8x1xf32> to vector<8x8xf32>
    %128 = arith.mulf %125, %127 : vector<8x8xf32>
    %129 = arith.addf %124, %128 : vector<8x8xf32>
    %130 = vector.extract_strided_slice %9 {offsets = [0, 192], sizes = [8, 8], strides = [1, 1]} : vector<8x264xf32> to vector<8x8xf32>
    %c0_33 = arith.constant 0 : index
    %c24 = arith.constant 24 : index
    %131 = vector.load %arg3[%c0_33, %c24] : memref<8x32xf32, #tpu.memory_space<vmem>>, vector<8x1xf32>
    %132 = vector.broadcast %131 : vector<8x1xf32> to vector<8x8xf32>
    %133 = arith.mulf %130, %132 : vector<8x8xf32>
    %134 = arith.addf %129, %133 : vector<8x8xf32>
    %135 = vector.extract_strided_slice %9 {offsets = [0, 200], sizes = [8, 8], strides = [1, 1]} : vector<8x264xf32> to vector<8x8xf32>
    %c0_34 = arith.constant 0 : index
    %c25 = arith.constant 25 : index
    %136 = vector.load %arg3[%c0_34, %c25] : memref<8x32xf32, #tpu.memory_space<vmem>>, vector<8x1xf32>
    %137 = vector.broadcast %136 : vector<8x1xf32> to vector<8x8xf32>
    %138 = arith.mulf %135, %137 : vector<8x8xf32>
    %139 = arith.addf %134, %138 : vector<8x8xf32>
    %140 = vector.extract_strided_slice %9 {offsets = [0, 208], sizes = [8, 8], strides = [1, 1]} : vector<8x264xf32> to vector<8x8xf32>
    %c0_35 = arith.constant 0 : index
    %c26 = arith.constant 26 : index
    %141 = vector.load %arg3[%c0_35, %c26] : memref<8x32xf32, #tpu.memory_space<vmem>>, vector<8x1xf32>
    %142 = vector.broadcast %141 : vector<8x1xf32> to vector<8x8xf32>
    %143 = arith.mulf %140, %142 : vector<8x8xf32>
    %144 = arith.addf %139, %143 : vector<8x8xf32>
    %145 = vector.extract_strided_slice %9 {offsets = [0, 216], sizes = [8, 8], strides = [1, 1]} : vector<8x264xf32> to vector<8x8xf32>
    %c0_36 = arith.constant 0 : index
    %c27 = arith.constant 27 : index
    %146 = vector.load %arg3[%c0_36, %c27] : memref<8x32xf32, #tpu.memory_space<vmem>>, vector<8x1xf32>
    %147 = vector.broadcast %146 : vector<8x1xf32> to vector<8x8xf32>
    %148 = arith.mulf %145, %147 : vector<8x8xf32>
    %149 = arith.addf %144, %148 : vector<8x8xf32>
    %150 = vector.extract_strided_slice %9 {offsets = [0, 224], sizes = [8, 8], strides = [1, 1]} : vector<8x264xf32> to vector<8x8xf32>
    %c0_37 = arith.constant 0 : index
    %c28 = arith.constant 28 : index
    %151 = vector.load %arg3[%c0_37, %c28] : memref<8x32xf32, #tpu.memory_space<vmem>>, vector<8x1xf32>
    %152 = vector.broadcast %151 : vector<8x1xf32> to vector<8x8xf32>
    %153 = arith.mulf %150, %152 : vector<8x8xf32>
    %154 = arith.addf %149, %153 : vector<8x8xf32>
    %155 = vector.extract_strided_slice %9 {offsets = [0, 232], sizes = [8, 8], strides = [1, 1]} : vector<8x264xf32> to vector<8x8xf32>
    %c0_38 = arith.constant 0 : index
    %c29 = arith.constant 29 : index
    %156 = vector.load %arg3[%c0_38, %c29] : memref<8x32xf32, #tpu.memory_space<vmem>>, vector<8x1xf32>
    %157 = vector.broadcast %156 : vector<8x1xf32> to vector<8x8xf32>
    %158 = arith.mulf %155, %157 : vector<8x8xf32>
    %159 = arith.addf %154, %158 : vector<8x8xf32>
    %160 = vector.extract_strided_slice %9 {offsets = [0, 240], sizes = [8, 8], strides = [1, 1]} : vector<8x264xf32> to vector<8x8xf32>
    %c0_39 = arith.constant 0 : index
    %c30 = arith.constant 30 : index
    %161 = vector.load %arg3[%c0_39, %c30] : memref<8x32xf32, #tpu.memory_space<vmem>>, vector<8x1xf32>
    %162 = vector.broadcast %161 : vector<8x1xf32> to vector<8x8xf32>
    %163 = arith.mulf %160, %162 : vector<8x8xf32>
    %164 = arith.addf %159, %163 : vector<8x8xf32>
    %165 = vector.extract_strided_slice %9 {offsets = [0, 248], sizes = [8, 8], strides = [1, 1]} : vector<8x264xf32> to vector<8x8xf32>
    %c0_40 = arith.constant 0 : index
    %c31 = arith.constant 31 : index
    %166 = vector.load %arg3[%c0_40, %c31] : memref<8x32xf32, #tpu.memory_space<vmem>>, vector<8x1xf32>
    %167 = vector.broadcast %166 : vector<8x1xf32> to vector<8x8xf32>
    %168 = arith.mulf %165, %167 : vector<8x8xf32>
    %169 = arith.addf %164, %168 : vector<8x8xf32>
    %170 = vector.extract_strided_slice %9 {offsets = [0, 256], sizes = [8, 8], strides = [1, 1]} : vector<8x264xf32> to vector<8x8xf32>
    %171 = arith.addf %169, %170 : vector<8x8xf32>
    %c0_41 = arith.constant 0 : index
    %c0_42 = arith.constant 0 : index
    %172 = vector.load %arg6[%c0_41, %c0_42] : memref<8x8xf32, #tpu.memory_space<vmem>>, vector<8x8xf32>
    tpu.vector_store %arg6[%c0_41, %c0_42], %171 {strides = array<i32>} : memref<8x8xf32, #tpu.memory_space<vmem>>, vector<8x8xf32>,
    return
  }
  func.func @transform_0(%arg0: i32, %arg1: i32) -> (i32, i32) {
    %c0_i32 = arith.constant 0 : i32
    %c0_i32_0 = arith.constant 0 : i32
    return %arg1, %c0_i32 : i32, i32
  }
  func.func @transform_1(%arg0: i32, %arg1: i32) -> (i32, i32) {
    %c0_i32 = arith.constant 0 : i32
    %c0_i32_0 = arith.constant 0 : i32
    return %arg1, %c0_i32 : i32, i32
  }
  func.func @transform_2(%arg0: i32, %arg1: i32) -> (i32, i32, i32) {
    %c0_i32 = arith.constant 0 : i32
    %c0_i32_0 = arith.constant 0 : i32
    %c0_i32_1 = arith.constant 0 : i32
    return %arg0, %c0_i32, %c0_i32_0 : i32, i32, i32
  }
  func.func @transform_3(%arg0: i32, %arg1: i32) -> (i32, i32, i32) {
    %c0_i32 = arith.constant 0 : i32
    %c0_i32_0 = arith.constant 0 : i32
    %c0_i32_1 = arith.constant 0 : i32
    return %arg0, %c0_i32, %c0_i32_0 : i32, i32, i32
  }
  func.func @transform_4(%arg0: i32, %arg1: i32) -> (i32, i32) {
    %c0_i32 = arith.constant 0 : i32
    return %arg1, %arg0 : i32, i32
  }
}

</mosaic_0001>

<llo_original>
// kernel: tpu_custom_call.1
$region0: #{tpu_custom_call.1}
  #allocation0 [shape = 'u32[]', space=smem, size = 0x4, offset = 0x4, fixed_abs, tag = 'smem constant byte address 0x4 - core index']
  #allocation1 [shape = 'u32[144,128]{1,0:T(1,128)}', space=vmem, size = 0x12000, scoped, tag = 'internal scratch']
  %s0 = inlined_call_operand.vmem [shape: f32[8,32], index: 0, kind: input, shape index: {}]
  %s1 = inlined_call_operand.vmem [shape: f32[8,32], index: 1, kind: input, shape index: {}]
  %s2 = inlined_call_operand.vmem [shape: bf16[1,264,32], index: 2, kind: input, shape index: {}]
  %s3 = inlined_call_operand.vmem [shape: f32[1,1,264], index: 3, kind: input, shape index: {}]
  %s4 = inlined_call_operand.hbm [shape: f32[8,8], index: 4, kind: output, shape index: {}]
  %s5 = sld [smem:[#allocation0]]
  $region26: #{tpu_custom_call.1} parent=0
    _
  %s7 = ssub.s32 1, %s5
  %s8 = scalar_select 0, %s7, %s5
  $region1: #{tpu_custom_call.1} parent=0
    #allocation2 [shape = 'u8[4096]{0}', space=vmem, size = 0x1000, scoped, tag = 'output window, operand 0, single buffered']
    #allocation3 [shape = 's32[1]{0}', space=sflag, size = 0x4, scoped, tag = 'scoped memory for tpu_custom_call.1']
    %9 = vsyncpa [#allocation3], 0
    // Predicated region
    $region2: #{tpu_custom_call.1} parent=1 // pred_check
      _
    $region3: #{tpu_custom_call.1} parent=1 // pred_check_branch
      %11 = sbr.rel (0) target = $region5
    $region4: #{tpu_custom_call.1} parent=1 // pred_region
      _
    $region5: #{tpu_custom_call.1} parent=1 // pred_fallthru
      _
    // Predicated region
    $region6: #{tpu_custom_call.1} parent=1 // pred_check
      _
    $region7: #{tpu_custom_call.1} parent=1 // pred_check_branch
      %13 = sbr.rel (0) target = $region9
    $region8: #{tpu_custom_call.1} parent=1 // pred_region
      _
    $region9: #{tpu_custom_call.1} parent=1 // pred_fallthru
      _
    // Predicated region
    $region10: #{tpu_custom_call.1} parent=1 // pred_check
      _
    $region11: #{tpu_custom_call.1} parent=1 // pred_check_branch
      %15 = sbr.rel (0) target = $region13
    $region12: #{tpu_custom_call.1} parent=1 // pred_region
      _
    $region13: #{tpu_custom_call.1} parent=1 // pred_fallthru
      _
    // Predicated region
    $region14: #{tpu_custom_call.1} parent=1 // pred_check
      _
    $region15: #{tpu_custom_call.1} parent=1 // pred_check_branch
      %17 = sbr.rel (0) target = $region17
    $region16: #{tpu_custom_call.1} parent=1 // pred_region
      _
    $region17: #{tpu_custom_call.1} parent=1 // pred_fallthru
      _
    %v19 = vld [vmem:[%s0] sm:$0xff]
    %v20 = vpack.c.bf16 %v19, %v19
    %v21 = vld [vmem:[%s3] sm:$0x7]
    %v22 = vld [vmem:[%s2] sm:$0xf]
    %v23 = vld [vmem:[%s2 + $0x4] sm:$0xf]
    %v24 = vld [vmem:[%s2 + $0x8] sm:$0xf]
    %v25 = vld [vmem:[%s2 + $0xc] sm:$0xf]
    %v26 = vld [vmem:[%s2 + $0x10] sm:$0xf]
    %v27 = vld [vmem:[%s2 + $0x14] sm:$0xf]
    %v28 = vld [vmem:[%s2 + $0x18] sm:$0xf]
    %v29 = vld [vmem:[%s2 + $0x1c] sm:$0xf]
    %v30 = vld [vmem:[%s2 + $0x20] sm:$0xf]
    %v31 = vld [vmem:[%s2 + $0x24] sm:$0xf]
    %v32 = vld [vmem:[%s2 + $0x28] sm:$0xf]
    %v33 = vld [vmem:[%s2 + $0x2c] sm:$0xf]
    %v34 = vld [vmem:[%s2 + $0x30] sm:$0xf]
    %v35 = vld [vmem:[%s2 + $0x34] sm:$0xf]
    %v36 = vld [vmem:[%s2 + $0x38] sm:$0xf]
    %v37 = vld [vmem:[%s2 + $0x3c] sm:$0xf]
    %v38 = vld [vmem:[%s2 + $0x40] sm:$0xf]
    %v39 = vld [vmem:[%s2 + $0x44] sm:$0xf]
    %v40 = vld [vmem:[%s2 + $0x48] sm:$0xf]
    %v41 = vld [vmem:[%s2 + $0x4c] sm:$0xf]
    %v42 = vld [vmem:[%s2 + $0x50] sm:$0xf]
    %v43 = vld [vmem:[%s2 + $0x54] sm:$0xf]
    %v44 = vld [vmem:[%s2 + $0x58] sm:$0xf]
    %v45 = vld [vmem:[%s2 + $0x5c] sm:$0xf]
    %v46 = vld [vmem:[%s2 + $0x60] sm:$0xf]
    %v47 = vld [vmem:[%s2 + $0x64] sm:$0xf]
    %v48 = vld [vmem:[%s2 + $0x68] sm:$0xf]
    %v49 = vld [vmem:[%s2 + $0x6c] sm:$0xf]
    %v50 = vld [vmem:[%s2 + $0x70] sm:$0xf]
    %v51 = vld [vmem:[%s2 + $0x74] sm:$0xf]
    %v52 = vld [vmem:[%s2 + $0x78] sm:$0xf]
    %v53 = vld [vmem:[%s2 + $0x7c] sm:$0xf]
    %v54 = vld [vmem:[%s2 + $0x80] sm:$0xf]
    %v56 = vlaneseq
    %v57 = vshrl.u32 %v56, 7
    %v58 = vsub.s32 0, %v57
    %v59 = vrot.slane %v21, %v58
    %v60 = vlaneseq
    %v61 = vshrl.u32 %v60, 7
    %v62 = vsub.s32 1, %v61
    %v63 = vrot.slane %v21, %v62
    %v64 = vlaneseq
    %v65 = vshrl.u32 %v64, 7
    %v66 = vsub.s32 2, %v65
    %v67 = vrot.slane %v21, %v66
    %v104 = vunpack.c.l.b16 %v22
    %v105 = vunpack.c.l.b16 %v23
    %v106 = vunpack.c.l.b16 %v24
    %v107 = vunpack.c.l.b16 %v25
    %v108 = vunpack.c.l.b16 %v26
    %v109 = vunpack.c.l.b16 %v27
    %v110 = vunpack.c.l.b16 %v28
    %v111 = vunpack.c.l.b16 %v29
    %v112 = vunpack.c.l.b16 %v30
    %v113 = vunpack.c.l.b16 %v31
    %v114 = vunpack.c.l.b16 %v32
    %v115 = vunpack.c.l.b16 %v33
    %v116 = vunpack.c.l.b16 %v34
    %v117 = vunpack.c.l.b16 %v35
    %v118 = vunpack.c.l.b16 %v36
    %v119 = vunpack.c.l.b16 %v37
    %v120 = vunpack.c.l.b16 %v38
    %v121 = vunpack.c.l.b16 %v39
    %v122 = vunpack.c.l.b16 %v40
    %v123 = vunpack.c.l.b16 %v41
    %v124 = vunpack.c.l.b16 %v42
    %v125 = vunpack.c.l.b16 %v43
    %v126 = vunpack.c.l.b16 %v44
    %v127 = vunpack.c.l.b16 %v45
    %v128 = vunpack.c.l.b16 %v46
    %v129 = vunpack.c.l.b16 %v47
    %v130 = vunpack.c.l.b16 %v48
    %v131 = vunpack.c.l.b16 %v49
    %v132 = vunpack.c.l.b16 %v50
    %v133 = vunpack.c.l.b16 %v51
    %v134 = vunpack.c.l.b16 %v52
    %v135 = vunpack.c.l.b16 %v53
    %v136 = vunpack.c.l.b16 %v54
    %v137 = vpack.c.b16 %v105, %v104
    %v138 = vpack.c.b16 %v107, %v106
    %v139 = vpack.c.b16 %v109, %v108
    %v140 = vpack.c.b16 %v111, %v110
    %v141 = vpack.c.b16 %v113, %v112
    %v142 = vpack.c.b16 %v115, %v114
    %v143 = vpack.c.b16 %v117, %v116
    %v144 = vpack.c.b16 %v119, %v118
    %v145 = vpack.c.b16 %v121, %v120
    %v146 = vpack.c.b16 %v123, %v122
    %v147 = vpack.c.b16 %v125, %v124
    %v148 = vpack.c.b16 %v127, %v126
    %v149 = vpack.c.b16 %v129, %v128
    %v150 = vpack.c.b16 %v131, %v130
    %v151 = vpack.c.b16 %v133, %v132
    %v152 = vpack.c.b16 %v135, %v134
    %v153 = vpack.c.b16 %v136, %v136
    %vm154 = vcmask 261120
    %v156 = vsel %vm154, %v20, 0
    %v159 = vsel %vm154, %v137, 0
    %v162 = vsel %vm154, %v138, 0
    %v165 = vsel %vm154, %v139, 0
    %v168 = vsel %vm154, %v140, 0
    %v171 = vsel %vm154, %v141, 0
    %v174 = vsel %vm154, %v142, 0
    %v177 = vsel %vm154, %v143, 0
    %v180 = vsel %vm154, %v144, 0
    %v183 = vsel %vm154, %v145, 0
    %v186 = vsel %vm154, %v146, 0
    %v189 = vsel %vm154, %v147, 0
    %v192 = vsel %vm154, %v148, 0
    %v195 = vsel %vm154, %v149, 0
    %v198 = vsel %vm154, %v150, 0
    %v201 = vsel %vm154, %v151, 0
    %v204 = vsel %vm154, %v152, 0
    %v207 = vsel %vm154, %v153, 0
    %209 = vmatprep.subr.bf16.mxu0 0
    %210 = vmatpush1.bf16.xpose.msra.mxu0 %v180
    %211 = vmatprep.subr.bf16.mxu0 0
    %212 = vmatpush1.bf16.xpose.msra.mxu0 %v177
    %213 = vmatprep.subr.bf16.mxu0 0
    %214 = vmatpush1.bf16.xpose.msra.mxu0 %v174
    %215 = vmatprep.subr.bf16.mxu0 0
    %216 = vmatpush1.bf16.xpose.msra.mxu0 %v171
    %217 = vmatprep.subr.bf16.mxu0 0
    %218 = vmatpush1.bf16.xpose.msra.mxu0 %v168
    %219 = vmatprep.subr.bf16.mxu0 0
    %220 = vmatpush1.bf16.xpose.msra.mxu0 %v165
    %221 = vmatprep.subr.bf16.mxu0 0
    %222 = vmatpush1.bf16.xpose.msra.mxu0 %v162
    %223 = vmatprep.subr.bf16.mxu0 0
    %224 = vmatpush1.bf16.xpose.msra.mxu0 %v159
    %225 = vmatprep.subr.bf16.mxu0 0
    %226 = vmatpush2.bf16.xpose.msra.mxu0 %v204
    %227 = vmatprep.subr.bf16.mxu0 0
    %228 = vmatpush2.bf16.xpose.msra.mxu0 %v201
    %229 = vmatprep.subr.bf16.mxu0 0
    %230 = vmatpush2.bf16.xpose.msra.mxu0 %v198
    %231 = vmatprep.subr.bf16.mxu0 0
    %232 = vmatpush2.bf16.xpose.msra.mxu0 %v195
    %233 = vmatprep.subr.bf16.mxu0 0
    %234 = vmatpush2.bf16.xpose.msra.mxu0 %v192
    %235 = vmatprep.subr.bf16.mxu0 0
    %236 = vmatpush2.bf16.xpose.msra.mxu0 %v189
    %237 = vmatprep.subr.bf16.mxu0 0
    %238 = vmatpush2.bf16.xpose.msra.mxu0 %v186
    %239 = vmatprep.subr.bf16.mxu0 0
    %240 = vmatpush2.bf16.xpose.msra.mxu0 %v183
    %241 = vmatprep.mubr.bf16.mxu0 0
    %242 = vmatmul.mubr.bf16.gmra.mxu0 %v156
    %v243 = vpop.f32.mrf.mxu0
    %v244 = vadd.f32 %v59, %v243
    %v245 = vpop.f32.mrf.mxu0
    %v246 = vadd.f32 %v63, %v245
    %v247 = vpop.f32.mrf.mxu0
    %v248 = vpop.f32.mrf.mxu0
    %249 = vdwg.mxu0
    %250 = vmatprep.subr.bf16.mxu0 0
    %251 = vmatpush1.bf16.xpose.msra.mxu0 0
    %252 = vmatprep.subr.bf16.mxu0 0
    %253 = vmatpush1.bf16.xpose.msra.mxu0 0
    %254 = vmatprep.subr.bf16.mxu0 0
    %255 = vmatpush1.bf16.xpose.msra.mxu0 0
    %256 = vmatprep.subr.bf16.mxu0 0
    %257 = vmatpush1.bf16.xpose.msra.mxu0 0
    %258 = vmatprep.subr.bf16.mxu0 0
    %259 = vmatpush1.bf16.xpose.msra.mxu0 0
    %260 = vmatprep.subr.bf16.mxu0 0
    %261 = vmatpush1.bf16.xpose.msra.mxu0 0
    %262 = vmatprep.subr.bf16.mxu0 0
    %263 = vmatpush1.bf16.xpose.msra.mxu0 0
    %264 = vmatprep.subr.bf16.mxu0 0
    %265 = vmatpush1.bf16.xpose.msra.mxu0 %v207
    %266 = vmatprep.subr.bf16.mxu0 0
    %267 = vmatpush2.bf16.xpose.msra.mxu0 0
    %268 = vmatprep.subr.bf16.mxu0 0
    %269 = vmatpush2.bf16.xpose.msra.mxu0 0
    %270 = vmatprep.subr.bf16.mxu0 0
    %271 = vmatpush2.bf16.xpose.msra.mxu0 0
    %272 = vmatprep.subr.bf16.mxu0 0
    %273 = vmatpush2.bf16.xpose.msra.mxu0 0
    %274 = vmatprep.subr.bf16.mxu0 0
    %275 = vmatpush2.bf16.xpose.msra.mxu0 0
    %276 = vmatprep.subr.bf16.mxu0 0
    %277 = vmatpush2.bf16.xpose.msra.mxu0 0
    %278 = vmatprep.subr.bf16.mxu0 0
    %279 = vmatpush2.bf16.xpose.msra.mxu0 0
    %280 = vmatprep.subr.bf16.mxu0 0
    %281 = vmatpush2.bf16.xpose.msra.mxu0 0
    %282 = vmatprep.mubr.bf16.mxu0 0
    %283 = vmatmul.mubr.bf16.gmra.mxu0 %v156
    %v284 = vpop.f32.mrf.mxu0
    %v285 = vadd.f32 %v67, %v284
    %v286 = vpop.f32.mrf.mxu0
    %v287 = vpop.f32.mrf.mxu0
    %v288 = vpop.f32.mrf.mxu0
    %289 = vdwg.mxu0
    %v290 = vld [vmem:[%s1] sm:$0xff]
    %292 = vset.pattern.permute.xlu0 0
    %293 = vperm.xlu0 %292, %v290
    %v294 = vpop.permute.xlu0 %293
    %v296 = vmul.f32 %v244, %v294
    %v297 = vadd.f32 %v296, 0.0
    %298 = vset.pattern.permute.xlu0 1
    %299 = vperm.xlu0 %298, %v290
    %v300 = vpop.permute.xlu0 %299
    %v302 = vmul.f32 %v244, %v300
    %304 = vrot.lane.b32.xlu0 %v302, 120
    %v305 = vpop.permute.xlu0 %304
    %v307 = vadd.f32 %v297, %v305
    %308 = vset.pattern.permute.xlu0 2
    %309 = vperm.xlu0 %308, %v290
    %v310 = vpop.permute.xlu0 %309
    %v312 = vmul.f32 %v244, %v310
    %314 = vrot.lane.b32.xlu0 %v312, 112
    %v315 = vpop.permute.xlu0 %314
    %v317 = vadd.f32 %v307, %v315
    %318 = vset.pattern.permute.xlu0 3
    %319 = vperm.xlu0 %318, %v290
    %v320 = vpop.permute.xlu0 %319
    %v322 = vmul.f32 %v244, %v320
    %324 = vrot.lane.b32.xlu0 %v322, 104
    %v325 = vpop.permute.xlu0 %324
    %v327 = vadd.f32 %v317, %v325
    %328 = vset.pattern.permute.xlu0 4
    %329 = vperm.xlu0 %328, %v290
    %v330 = vpop.permute.xlu0 %329
    %v332 = vmul.f32 %v244, %v330
    %334 = vrot.lane.b32.xlu0 %v332, 96
    %v335 = vpop.permute.xlu0 %334
    %v337 = vadd.f32 %v327, %v335
    %338 = vset.pattern.permute.xlu0 5
    %339 = vperm.xlu0 %338, %v290
    %v340 = vpop.permute.xlu0 %339
    %v342 = vmul.f32 %v244, %v340
    %344 = vrot.lane.b32.xlu0 %v342, 88
    %v345 = vpop.permute.xlu0 %344
    %v347 = vadd.f32 %v337, %v345
    %348 = vset.pattern.permute.xlu0 6
    %349 = vperm.xlu0 %348, %v290
    %v350 = vpop.permute.xlu0 %349
    %v352 = vmul.f32 %v244, %v350
    %354 = vrot.lane.b32.xlu0 %v352, 80
    %v355 = vpop.permute.xlu0 %354
    %v357 = vadd.f32 %v347, %v355
    %358 = vset.pattern.permute.xlu0 7
    %359 = vperm.xlu0 %358, %v290
    %v360 = vpop.permute.xlu0 %359
    %v362 = vmul.f32 %v244, %v360
    %364 = vrot.lane.b32.xlu0 %v362, 72
    %v365 = vpop.permute.xlu0 %364
    %v367 = vadd.f32 %v357, %v365
    %368 = vset.pattern.permute.xlu0 8
    %369 = vperm.xlu0 %368, %v290
    %v370 = vpop.permute.xlu0 %369
    %v372 = vmul.f32 %v244, %v370
    %374 = vrot.lane.b32.xlu0 %v372, 64
    %v375 = vpop.permute.xlu0 %374
    %v377 = vadd.f32 %v367, %v375
    %378 = vset.pattern.permute.xlu0 9
    %379 = vperm.xlu0 %378, %v290
    %v380 = vpop.permute.xlu0 %379
    %v382 = vmul.f32 %v244, %v380
    %384 = vrot.lane.b32.xlu0 %v382, 56
    %v385 = vpop.permute.xlu0 %384
    %v387 = vadd.f32 %v377, %v385
    %388 = vset.pattern.permute.xlu0 10
    %389 = vperm.xlu0 %388, %v290
    %v390 = vpop.permute.xlu0 %389
    %v392 = vmul.f32 %v244, %v390
    %394 = vrot.lane.b32.xlu0 %v392, 48
    %v395 = vpop.permute.xlu0 %394
    %v397 = vadd.f32 %v387, %v395
    %398 = vset.pattern.permute.xlu0 11
    %399 = vperm.xlu0 %398, %v290
    %v400 = vpop.permute.xlu0 %399
    %v402 = vmul.f32 %v244, %v400
    %404 = vrot.lane.b32.xlu0 %v402, 40
    %v405 = vpop.permute.xlu0 %404
    %v407 = vadd.f32 %v397, %v405
    %408 = vset.pattern.permute.xlu0 12
    %409 = vperm.xlu0 %408, %v290
    %v410 = vpop.permute.xlu0 %409
    %v412 = vmul.f32 %v244, %v410
    %414 = vrot.lane.b32.xlu0 %v412, 32
    %v415 = vpop.permute.xlu0 %414
    %v417 = vadd.f32 %v407, %v415
    %418 = vset.pattern.permute.xlu0 13
    %419 = vperm.xlu0 %418, %v290
    %v420 = vpop.permute.xlu0 %419
    %v422 = vmul.f32 %v244, %v420
    %424 = vrot.lane.b32.xlu0 %v422, 24
    %v425 = vpop.permute.xlu0 %424
    %v427 = vadd.f32 %v417, %v425
    %428 = vset.pattern.permute.xlu0 14
    %429 = vperm.xlu0 %428, %v290
    %v430 = vpop.permute.xlu0 %429
    %v432 = vmul.f32 %v244, %v430
    %434 = vrot.lane.b32.xlu0 %v432, 16
    %v435 = vpop.permute.xlu0 %434
    %v437 = vadd.f32 %v427, %v435
    %438 = vset.pattern.permute.xlu0 15
    %439 = vperm.xlu0 %438, %v290
    %v440 = vpop.permute.xlu0 %439
    %v442 = vmul.f32 %v244, %v440
    %444 = vrot.lane.b32.xlu0 %v442, 8
    %v445 = vpop.permute.xlu0 %444
    %v447 = vadd.f32 %v437, %v445
    %448 = vset.pattern.permute.xlu0 16
    %449 = vperm.xlu0 %448, %v290
    %v450 = vpop.permute.xlu0 %449
    %v452 = vmul.f32 %v246, %v450
    %v453 = vadd.f32 %v447, %v452
    %454 = vset.pattern.permute.xlu0 17
    %455 = vperm.xlu0 %454, %v290
    %v456 = vpop.permute.xlu0 %455
    %v458 = vmul.f32 %v246, %v456
    %460 = vrot.lane.b32.xlu0 %v458, 120
    %v461 = vpop.permute.xlu0 %460
    %v463 = vadd.f32 %v453, %v461
    %464 = vset.pattern.permute.xlu0 18
    %465 = vperm.xlu0 %464, %v290
    %v466 = vpop.permute.xlu0 %465
    %v468 = vmul.f32 %v246, %v466
    %470 = vrot.lane.b32.xlu0 %v468, 112
    %v471 = vpop.permute.xlu0 %470
    %v473 = vadd.f32 %v463, %v471
    %474 = vset.pattern.permute.xlu0 19
    %475 = vperm.xlu0 %474, %v290
    %v476 = vpop.permute.xlu0 %475
    %v478 = vmul.f32 %v246, %v476
    %480 = vrot.lane.b32.xlu0 %v478, 104
    %v481 = vpop.permute.xlu0 %480
    %v483 = vadd.f32 %v473, %v481
    %484 = vset.pattern.permute.xlu0 20
    %485 = vperm.xlu0 %484, %v290
    %v486 = vpop.permute.xlu0 %485
    %v488 = vmul.f32 %v246, %v486
    %490 = vrot.lane.b32.xlu0 %v488, 96
    %v491 = vpop.permute.xlu0 %490
    %v493 = vadd.f32 %v483, %v491
    %494 = vset.pattern.permute.xlu0 21
    %495 = vperm.xlu0 %494, %v290
    %v496 = vpop.permute.xlu0 %495
    %v498 = vmul.f32 %v246, %v496
    %500 = vrot.lane.b32.xlu0 %v498, 88
    %v501 = vpop.permute.xlu0 %500
    %v503 = vadd.f32 %v493, %v501
    %504 = vset.pattern.permute.xlu0 22
    %505 = vperm.xlu0 %504, %v290
    %v506 = vpop.permute.xlu0 %505
    %v508 = vmul.f32 %v246, %v506
    %510 = vrot.lane.b32.xlu0 %v508, 80
    %v511 = vpop.permute.xlu0 %510
    %v513 = vadd.f32 %v503, %v511
    %514 = vset.pattern.permute.xlu0 23
    %515 = vperm.xlu0 %514, %v290
    %v516 = vpop.permute.xlu0 %515
    %v518 = vmul.f32 %v246, %v516
    %520 = vrot.lane.b32.xlu0 %v518, 72
    %v521 = vpop.permute.xlu0 %520
    %v523 = vadd.f32 %v513, %v521
    %524 = vset.pattern.permute.xlu0 24
    %525 = vperm.xlu0 %524, %v290
    %v526 = vpop.permute.xlu0 %525
    %v528 = vmul.f32 %v246, %v526
    %530 = vrot.lane.b32.xlu0 %v528, 64
    %v531 = vpop.permute.xlu0 %530
    %v533 = vadd.f32 %v523, %v531
    %534 = vset.pattern.permute.xlu0 25
    %535 = vperm.xlu0 %534, %v290
    %v536 = vpop.permute.xlu0 %535
    %v538 = vmul.f32 %v246, %v536
    %540 = vrot.lane.b32.xlu0 %v538, 56
    %v541 = vpop.permute.xlu0 %540
    %v543 = vadd.f32 %v533, %v541
    %544 = vset.pattern.permute.xlu0 26
    %545 = vperm.xlu0 %544, %v290
    %v546 = vpop.permute.xlu0 %545
    %v548 = vmul.f32 %v246, %v546
    %550 = vrot.lane.b32.xlu0 %v548, 48
    %v551 = vpop.permute.xlu0 %550
    %v553 = vadd.f32 %v543, %v551
    %554 = vset.pattern.permute.xlu0 27
    %555 = vperm.xlu0 %554, %v290
    %v556 = vpop.permute.xlu0 %555
    %v558 = vmul.f32 %v246, %v556
    %560 = vrot.lane.b32.xlu0 %v558, 40
    %v561 = vpop.permute.xlu0 %560
    %v563 = vadd.f32 %v553, %v561
    %564 = vset.pattern.permute.xlu0 28
    %565 = vperm.xlu0 %564, %v290
    %v566 = vpop.permute.xlu0 %565
    %v568 = vmul.f32 %v246, %v566
    %570 = vrot.lane.b32.xlu0 %v568, 32
    %v571 = vpop.permute.xlu0 %570
    %v573 = vadd.f32 %v563, %v571
    %574 = vset.pattern.permute.xlu0 29
    %575 = vperm.xlu0 %574, %v290
    %v576 = vpop.permute.xlu0 %575
    %v578 = vmul.f32 %v246, %v576
    %580 = vrot.lane.b32.xlu0 %v578, 24
    %v581 = vpop.permute.xlu0 %580
    %v583 = vadd.f32 %v573, %v581
    %584 = vset.pattern.permute.xlu0 30
    %585 = vperm.xlu0 %584, %v290
    %v586 = vpop.permute.xlu0 %585
    %v588 = vmul.f32 %v246, %v586
    %590 = vrot.lane.b32.xlu0 %v588, 16
    %v591 = vpop.permute.xlu0 %590
    %v593 = vadd.f32 %v583, %v591
    %594 = vset.pattern.permute.xlu0 31
    %595 = vperm.xlu0 %594, %v290
    %v596 = vpop.permute.xlu0 %595
    %v598 = vmul.f32 %v246, %v596
    %600 = vrot.lane.b32.xlu0 %v598, 8
    %v601 = vpop.permute.xlu0 %600
    %v603 = vadd.f32 %v593, %v601
    %v604 = vadd.f32 %v603, %v285
    %vm605 = vcmask 64512
    %606 = vst.msk [vmem:[#allocation2] sm:$0xff] %vm605, %v604
    // Predicated region
    $region18: #{tpu_custom_call.1} parent=1 // pred_check
      _
    $region19: #{tpu_custom_call.1} parent=1 // pred_check_branch
      %608 = sbr.rel (0) target = $region21
    $region20: #{tpu_custom_call.1} parent=1 // pred_region
      %s610 = ssub.s32 128, 128
      %611 = vsyncadd [#allocation3], %s610
      %s613 = sshll.u32 [#allocation2], 4
      %s614 = int_to_ptr.vmem [resolvable:$true] %s613
      %616 = dma.vmem_to_hbm [thread:$0]  %s614, 128, %s4, [#allocation3]
    $region21: #{tpu_custom_call.1} parent=1 // pred_fallthru
      _
    // Predicated region
    $region22: #{tpu_custom_call.1} parent=1 // pred_check
      _
    $region23: #{tpu_custom_call.1} parent=1 // pred_check_branch
      %618 = sbr.rel (0) target = $region25
    $region24: #{tpu_custom_call.1} parent=1 // pred_region
      %619 = dma.done [#allocation3], 128
    $region25: #{tpu_custom_call.1} parent=1 // pred_fallthru
      _
    %620 = vsyncpa [#allocation3], 1

</llo_original>
